<compile_context>
chip_gen: v5e
topology: v5e:2x2
jax: 0.10.0
libtpu: 0.0.40
codegen_flags: <defaults>
</compile_context>

<pallas_src>
import functools
import math

import jax
import jax.numpy as jnp
from jax.experimental import pallas as pl
from jax.experimental.pallas import tpu as pltpu

LANE = 128  # vreg lane width: pad K and N to this for dense, unmasked loads/stores.


def _round_up(n: int, m: int) -> int:
    return ((n + m - 1) // m) * m


def linear_kernel(x_ref, w_ref, b_ref, o_ref):
    # x_ref: (1, k_pad) f32  — cast to bf16 in-kernel (free VALU slot under MXU).
    # w_ref: (k_pad, out_pad) bf16, b_ref: (1, out_pad) f32, o_ref: (1, out_pad) f32.
    x_bf = x_ref[...].astype(jnp.bfloat16)
    acc = jnp.dot(x_bf, w_ref[...], preferred_element_type=jnp.float32)
    o_ref[...] = acc + b_ref[...]  # bias folded into the single store epilogue


def init_params(key, in_dim, out_dim):
    """Deterministic param init mirroring nn.init.xavier_uniform_ + zeros_ (f32)."""
    bound = math.sqrt(6.0 / (in_dim + out_dim))
    w = jax.random.uniform(
        key, (in_dim, out_dim), dtype=jnp.float32, minval=-bound, maxval=bound
    )
    b = jnp.zeros((out_dim,), dtype=jnp.float32)
    return w, b


def prepare_params(weights, bias):
    """One-time conversion (never per forward):

      * W -> bf16, zero-padded to (k_pad, out_pad) with k_pad/out_pad multiples
        of 128 (lane-dense N stores, no ragged K edge on the MXU contraction).
      * b -> f32, zero-padded to (1, out_pad).

    Returns (w_pad, b_pad). Padded output columns equal the zero bias; slice
    them off only at the final consumer.
    """
    in_dim, out_dim = weights.shape
    k_pad = _round_up(in_dim, LANE)
    out_pad = _round_up(out_dim, LANE)
    w_pad = jnp.zeros((k_pad, out_pad), dtype=jnp.bfloat16)
    w_pad = w_pad.at[:in_dim, :out_dim].set(weights.astype(jnp.bfloat16))
    b_pad = jnp.zeros((1, out_pad), dtype=jnp.float32)
    b_pad = b_pad.at[:, :out_dim].set(bias.astype(jnp.float32))
    return w_pad, b_pad


@functools.partial(jax.jit, static_argnames=("in_dim",))
def linear_model_forward(x, w_pad, b_pad, *, in_dim):
    """x: arbitrary-shaped array, flattened row-major like torch .view(1, -1).

    Returns the LANE-dense padded output (1, out_pad) float32. Slice
    [:, :out_dim] only at the final consumer (keeps downstream stores unmasked
    and saves a dispatch per call).
    """
    k_pad, out_pad = w_pad.shape
    x_flat = x.reshape(1, -1)  # glue: torch .view(1, -1); stays f32
    assert x_flat.shape[1] == in_dim, "flattened input must match in_dim"
    if in_dim != k_pad:  # static Python check: pad op only exists when needed
        x_flat = jnp.pad(x_flat, ((0, 0), (0, k_pad - in_dim)))

    # No grid: the whole problem is a few KiB, so arrays are single full VMEM
    # blocks — skips the 1-point-grid pipeline prologue/epilogue entirely.
    # TODO(synk): when bf16 W approaches the scoped-VMEM limit (16/32/32 MiB
    #             default on v5e/v6e/v7x), raise vmem_limit_bytes or switch to
    #             the tiled-grid fallback described at the top of the file.
    return pl.pallas_call(
        linear_kernel,
        out_shape=jax.ShapeDtypeStruct((1, out_pad), jnp.float32),
        in_specs=[
            pl.BlockSpec(memory_space=pltpu.MemorySpace.VMEM),
            pl.BlockSpec(memory_space=pltpu.MemorySpace.VMEM),
            pl.BlockSpec(memory_space=pltpu.MemorySpace.VMEM),
        ],
        out_specs=pl.BlockSpec(memory_space=pltpu.MemorySpace.VMEM),
    )(x_flat, w_pad, b_pad)


if __name__ == "__main__":
    key = jax.random.PRNGKey(0)
    k_x, k_w = jax.random.split(key)

    # Small shapes: input (4, 8) flattens to in_dim = 32; out_dim = 16.
    x = jax.random.normal(k_x, (4, 8), dtype=jnp.float32)
    in_dim = x.size
    out_dim = 16

    weights, bias = init_params(k_w, in_dim, out_dim)
    w_pad, b_pad = prepare_params(weights, bias)  # one-time cast/pad

    y_pad = linear_model_forward(x, w_pad, b_pad, in_dim=in_dim)
    jax.block_until_ready(y_pad)
    y = y_pad[:, :out_dim]  # slice only here, at the final consumer

    # Reference check in plain JAX, using the same bf16 operands the kernel sees.
    # TODO(synk): vs the true torch f64 reference expect ~1e-2-scale rel error
    #             for large in_dim (bf16 weight quantization), not 1e-4.
    x_bf = x.reshape(1, -1).astype(jnp.bfloat16)
    y_ref = (
        jnp.dot(x_bf, w_pad[:in_dim, :out_dim], preferred_element_type=jnp.float32)
        + bias
    )
    assert y.shape == (1, out_dim)
    assert jnp.allclose(y, y_ref, atol=1e-4, rtol=1e-4)

    print("KERNEL_OK")
</pallas_src>

<mosaic_0001>
module attributes {stable_mosaic.version = 11 : i64} {
  func.func @linear_kernel(%arg0: memref<1x128xf32, #tpu.memory_space<vmem>>, %arg1: memref<128x128xbf16, #tpu.memory_space<vmem>>, %arg2: memref<1x128xf32, #tpu.memory_space<vmem>>, %arg3: memref<1x128xf32, #tpu.memory_space<vmem>>) attributes {dimension_semantics = [], scalar_prefetch = 0 : i64, scratch_operands = 0 : i64, tpu.core_type = #tpu.core_type<tc>} {
    %c0 = arith.constant 0 : index
    %c0_0 = arith.constant 0 : index
    %0 = vector.load %arg0[%c0, %c0_0] : memref<1x128xf32, #tpu.memory_space<vmem>>, vector<1x128xf32>
    %1 = arith.truncf %0 : vector<1x128xf32> to vector<1x128xbf16>
    %c0_1 = arith.constant 0 : index
    %c0_2 = arith.constant 0 : index
    %2 = vector.load %arg1[%c0_1, %c0_2] : memref<128x128xbf16, #tpu.memory_space<vmem>>, vector<128x128xbf16>
    %cst = arith.constant dense<0.000000e+00> : vector<1x128xf32>
    %3 = tpu.matmul %1, %2, %cst {dimension_numbers = #tpu.dot_dimension_numbers<[1], [0], [0], [1], [0, 0, 1, 1], [], []>} : vector<1x128xbf16>, vector<128x128xbf16>, vector<1x128xf32> -> vector<1x128xf32>
    %c0_3 = arith.constant 0 : index
    %c0_4 = arith.constant 0 : index
    %4 = vector.load %arg2[%c0_3, %c0_4] : memref<1x128xf32, #tpu.memory_space<vmem>>, vector<1x128xf32>
    %5 = arith.addf %3, %4 : vector<1x128xf32>
    %c0_5 = arith.constant 0 : index
    %c0_6 = arith.constant 0 : index
    %6 = vector.load %arg3[%c0_5, %c0_6] : memref<1x128xf32, #tpu.memory_space<vmem>>, vector<1x128xf32>
    tpu.vector_store %arg3[%c0_5, %c0_6], %5 {strides = array<i32>} : memref<1x128xf32, #tpu.memory_space<vmem>>, vector<1x128xf32>,
    return
  }
}

</mosaic_0001>

<llo_original>
// kernel: linear_model_forward.1
$region0: #{linear_model_forward.1}
  #allocation0 [shape = 'u32[]', space=smem, size = 0x4, offset = 0x4, fixed_abs, tag = 'smem constant byte address 0x4 - core index']
  #allocation1 [shape = 'u32[72,128]{1,0:T(1,128)}', space=vmem, size = 0x9000, scoped, tag = 'internal scratch']
  %s0 = inlined_call_operand.vmem [shape: f32[1,128], index: 0, kind: input, shape index: {}]
  %s1 = inlined_call_operand.hbm [shape: bf16[128,128], index: 1, kind: input, shape index: {}]
  %s2 = inlined_call_operand.vmem [shape: f32[1,128], index: 2, kind: input, shape index: {}]
  %s3 = inlined_call_operand.hbm [shape: f32[1,128], index: 3, kind: output, shape index: {}]
  %s4 = sld [smem:[#allocation0]]
  $region26: #{linear_model_forward.1} parent=0
    _
  %s6 = ssub.s32 1, %s4
  %s7 = scalar_select 0, %s6, %s4
  $region1: #{linear_model_forward.1} parent=0
    #allocation2 [shape = 'u8[32768]{0}', space=vmem, size = 0x8000, scoped, tag = 'input window, operand 1, single buffered']
    #allocation3 [shape = 's32[1]{0}', space=sflag, size = 0x4, scoped, tag = 'scoped memory for linear_model_forward.1']
    #allocation4 [shape = 's32[1]{0}', space=sflag, size = 0x4, scoped, tag = 'scoped memory for linear_model_forward.1']
    #allocation5 [shape = 'u8[512]{0}', space=vmem, size = 0x400, scoped, tag = 'output window, operand 0, single buffered']
    %8 = vsyncpa [#allocation3], 0
    %9 = vsyncpa [#allocation4], 0
    // Predicated region
    $region2: #{linear_model_forward.1} parent=1 // pred_check
      _
    $region3: #{linear_model_forward.1} parent=1 // pred_check_branch
      %11 = sbr.rel (0) target = $region5
    $region4: #{linear_model_forward.1} parent=1 // pred_region
      _
    $region5: #{linear_model_forward.1} parent=1 // pred_fallthru
      _
    // Predicated region
    $region6: #{linear_model_forward.1} parent=1 // pred_check
      _
    $region7: #{linear_model_forward.1} parent=1 // pred_check_branch
      %13 = sbr.rel (0) target = $region9
    $region8: #{linear_model_forward.1} parent=1 // pred_region
      %15 = vsyncadd [#allocation3], 0
      %s16 = sshll.u32 %s1, 4
      %s17 = int_to_ptr.hbm [resolvable:$true] %s16
      %s18 = sshll.u32 [#allocation2], 4
      %s19 = int_to_ptr.vmem [resolvable:$true] %s18
      %24 = dma.hbm_to_vmem [thread:$0]  %s17, 1024, %s19, [#allocation3], 64, 64, 4
    $region9: #{linear_model_forward.1} parent=1 // pred_fallthru
      _
    // Predicated region
    $region10: #{linear_model_forward.1} parent=1 // pred_check
      _
    $region11: #{linear_model_forward.1} parent=1 // pred_check_branch
      %26 = sbr.rel (0) target = $region13
    $region12: #{linear_model_forward.1} parent=1 // pred_region
      _
    $region13: #{linear_model_forward.1} parent=1 // pred_fallthru
      _
    // Predicated region
    $region14: #{linear_model_forward.1} parent=1 // pred_check
      _
    $region15: #{linear_model_forward.1} parent=1 // pred_check_branch
      %28 = sbr.rel (0) target = $region17
    $region16: #{linear_model_forward.1} parent=1 // pred_region
      %30 = dma.done [#allocation3], 1024
    $region17: #{linear_model_forward.1} parent=1 // pred_fallthru
      _
    %v31 = vld [vmem:[%s0] sm:$0x1]
    %v32 = vpack.c.bf16 %v31, %v31
    %v33 = vld [vmem:[#allocation2] sm:$0xf]
    %v34 = vld [vmem:[#allocation2 + $0x4] sm:$0xf]
    %v35 = vld [vmem:[#allocation2 + $0x8] sm:$0xf]
    %v36 = vld [vmem:[#allocation2 + $0xc] sm:$0xf]
    %v37 = vld [vmem:[#allocation2 + $0x10] sm:$0xf]
    %v38 = vld [vmem:[#allocation2 + $0x14] sm:$0xf]
    %v39 = vld [vmem:[#allocation2 + $0x18] sm:$0xf]
    %v40 = vld [vmem:[#allocation2 + $0x1c] sm:$0xf]
    %v41 = vld [vmem:[#allocation2 + $0x20] sm:$0xf]
    %v42 = vld [vmem:[#allocation2 + $0x24] sm:$0xf]
    %v43 = vld [vmem:[#allocation2 + $0x28] sm:$0xf]
    %v44 = vld [vmem:[#allocation2 + $0x2c] sm:$0xf]
    %v45 = vld [vmem:[#allocation2 + $0x30] sm:$0xf]
    %v46 = vld [vmem:[#allocation2 + $0x34] sm:$0xf]
    %v47 = vld [vmem:[#allocation2 + $0x38] sm:$0xf]
    %v48 = vld [vmem:[#allocation2 + $0x3c] sm:$0xf]
    %v49 = vld [vmem:[%s2] sm:$0x1]
    %v66 = vunpack.c.l.b16 %v33
    %v67 = vunpack.c.l.b16 %v34
    %v68 = vunpack.c.l.b16 %v35
    %v69 = vunpack.c.l.b16 %v36
    %v70 = vunpack.c.l.b16 %v37
    %v71 = vunpack.c.l.b16 %v38
    %v72 = vunpack.c.l.b16 %v39
    %v73 = vunpack.c.l.b16 %v40
    %v74 = vunpack.c.l.b16 %v41
    %v75 = vunpack.c.l.b16 %v42
    %v76 = vunpack.c.l.b16 %v43
    %v77 = vunpack.c.l.b16 %v44
    %v78 = vunpack.c.l.b16 %v45
    %v79 = vunpack.c.l.b16 %v46
    %v80 = vunpack.c.l.b16 %v47
    %v81 = vunpack.c.l.b16 %v48
    %v82 = vpack.c.b16 %v67, %v66
    %v83 = vpack.c.b16 %v69, %v68
    %v84 = vpack.c.b16 %v71, %v70
    %v85 = vpack.c.b16 %v73, %v72
    %v86 = vpack.c.b16 %v75, %v74
    %v87 = vpack.c.b16 %v77, %v76
    %v88 = vpack.c.b16 %v79, %v78
    %v89 = vpack.c.b16 %v81, %v80
    %98 = vmatpush.bf16.msra.mxu0 %v89
    %99 = vmatpush.bf16.msra.mxu0 %v88
    %100 = vmatpush.bf16.msra.mxu0 %v87
    %101 = vmatpush.bf16.msra.mxu0 %v86
    %102 = vmatpush.bf16.msra.mxu0 %v85
    %103 = vmatpush.bf16.msra.mxu0 %v84
    %104 = vmatpush.bf16.msra.mxu0 %v83
    %105 = vmatpush.bf16.msra.mxu0 %v82
    %106 = vmatmul.bf16.gmra.mxu0 %v32
    %v107 = vpop.f32.mrf.mxu0
    %v108 = vadd.f32 %v49, %v107
    %v109 = vpop.f32.mrf.mxu0
    %110 = vdwg.mxu0
    %111 = vst [vmem:[#allocation5] sm:$0x1] %v108
    // Predicated region
    $region18: #{linear_model_forward.1} parent=1 // pred_check
      _
    $region19: #{linear_model_forward.1} parent=1 // pred_check_branch
      %113 = sbr.rel (0) target = $region21
    $region20: #{linear_model_forward.1} parent=1 // pred_region
      %115 = vsyncadd [#allocation4], 0
      %s117 = sshll.u32 [#allocation5], 4
      %s118 = int_to_ptr.vmem [resolvable:$true] %s117
      %s119 = sshll.u32 %s3, 4
      %s120 = int_to_ptr.hbm [resolvable:$true] %s119
      %122 = dma.vmem_to_hbm [thread:$0]  %s118, 16, %s120, [#allocation4]
    $region21: #{linear_model_forward.1} parent=1 // pred_fallthru
      _
    // Predicated region
    $region22: #{linear_model_forward.1} parent=1 // pred_check
      _
    $region23: #{linear_model_forward.1} parent=1 // pred_check_branch
      %124 = sbr.rel (0) target = $region25
    $region24: #{linear_model_forward.1} parent=1 // pred_region
      %126 = dma.done [#allocation4], 16
    $region25: #{linear_model_forward.1} parent=1 // pred_fallthru
      _
    %127 = vsyncpa [#allocation3], 1
    %128 = vsyncpa [#allocation4], 1

</llo_original>
